<compile_context>
chip_gen: v5e
topology: v5e:2x2
jax: 0.10.0
libtpu: 0.0.40
codegen_flags: <defaults>
</compile_context>

<pallas_src>
import jax
import jax.numpy as jnp
from jax.experimental import pallas as pl
from jax.experimental.pallas import tpu as pltpu


_LANE = 512  # lane-dense last dim (multiple of 128) -> full-width unmasked vst


def _round_up(v, m):
    return ((v + m - 1) // m) * m


def _tile_config():
    """Generation-aware (max_tile_rows, vmem_limit_bytes).

    Live VMEM for the streaming pipeline is 2x input + 2x output tile buffers
    = 4x tile bytes, so keep that well under the scoped limit.
    """
    try:
        vmem_cap = int(pltpu.get_tpu_info().vmem_capacity_bytes)
    except Exception:  # pragma: no cover - be conservative if query unavailable
        vmem_cap = 64 << 20  # assume the smallest (v7x per-TC)
    if vmem_cap >= (100 << 20):
        # v5e / v6e: 128 MiB physical VMEM.
        # 4096 x 512 x 4 B = 8 MiB tile -> 32 MiB live, limit 64 MiB.
        return 4096, 64 << 20
    # v7x: 64 MiB physical per TC.
    # 2048 x 512 x 4 B = 4 MiB tile -> 16 MiB live, limit 40 MiB (headroom).
    return 2048, 40 << 20


_MAX_TILE_ROWS, _VMEM_LIMIT = _tile_config()


def _fused_kernel(params_ref, x_ref, o_ref):
    # params_ref lives in SMEM: [w_pre, b_pre, A, B]
    #   h = x*w_pre + b_pre
    #   y = conv(h) = h*w_conv + b_conv = x*(w_pre*w_conv) + (b_pre*w_conv + b_conv)
    #     = x*A + B                        (affines folded in the wrapper)
    w_pre = params_ref[0]
    b_pre = params_ref[1]
    a = params_ref[2]
    b = params_ref[3]

    x = x_ref[...]
    h = x * w_pre + b_pre
    y = x * a + b

    # swish: y * sigmoid(y); sigmoid(y) = 0.5*tanh(0.5*y) + 0.5 — one EUP op,
    # exact and free of exp overflow. Kernel is HBM-bound, so this is free.
    sig = 0.5 * jnp.tanh(0.5 * y) + 0.5

    o_ref[...] = h + y * sig


def _pick_tile_rows(rows):
    if rows <= 8:
        return rows  # full-extent block (equals array dim), grid=(1,)
    # At least 2 grid steps (v7x megacore), 8-row sublane-aligned block.
    target = _round_up(-(-rows // 2), 8)
    return min(_MAX_TILE_ROWS, target)


@jax.jit
def m_forward(x_nchw, w_pre, b_pre, w_conv, b_conv):
    """x_nchw: (N, 1, H, W) float32. Returns (N, 1, H, W) float32."""
    n, c, h, w = x_nchw.shape
    dtype = x_nchw.dtype
    total = n * c * h * w

    rows = -(-total // _LANE)          # cdiv(total, LANE)
    padded_total = rows * _LANE
    needs_pad = padded_total != total  # static Python decision

    if needs_pad:
        # Ragged tail: pad only up to the next 512-multiple (< 2 KiB of extra
        # elements), not to a whole-tile multiple.
        flat = jnp.pad(x_nchw.reshape(-1), (0, padded_total - total))
        x2d = flat.reshape(rows, _LANE)
    else:
        # Free bitcast/reshape of a contiguous row-major tensor: no HBM pass.
        x2d = x_nchw.reshape(rows, _LANE)

    # Fold the two scalar affines for the y-branch (free scalar math).
    a_fold = w_pre * w_conv
    b_fold = b_pre * w_conv + b_conv
    params = jnp.stack([w_pre, b_pre, a_fold, b_fold]).astype(jnp.float32)  # (4,)

    tile_rows = _pick_tile_rows(rows)
    grid = (-(-rows // tile_rows),)    # partial last block handled by Pallas

    cost = pl.CostEstimate(
        flops=9 * padded_total,
        transcendentals=padded_total,      # one tanh per element
        bytes_accessed=8 * padded_total,   # 4 B read + 4 B write per element
    )

    out2d = pl.pallas_call(
        _fused_kernel,
        out_shape=jax.ShapeDtypeStruct((rows, _LANE), dtype),
        grid=grid,
        in_specs=[
            pl.BlockSpec(memory_space=pltpu.MemorySpace.SMEM),    # scalar params
            pl.BlockSpec((tile_rows, _LANE), lambda i: (i, 0)),   # x tile
        ],
        out_specs=pl.BlockSpec((tile_rows, _LANE), lambda i: (i, 0)),
        compiler_params=pltpu.CompilerParams(
            dimension_semantics=("parallel",),
            vmem_limit_bytes=_VMEM_LIMIT,
        ),
        cost_estimate=cost,
    )(params, x2d)

    if needs_pad:
        return out2d.reshape(-1)[:total].reshape(n, c, h, w)
    return out2d.reshape(n, c, h, w)


def m_forward_ref(x_nchw, w_pre, b_pre, w_conv, b_conv):
    """Pure-JAX reference for correctness checking."""
    h = x_nchw * w_pre + b_pre
    y = h * w_conv + b_conv
    y = y * jax.nn.sigmoid(y)
    return h + y


if __name__ == "__main__":
    key = jax.random.PRNGKey(0)
    kx, kw0, kb0, kw1, kb1 = jax.random.split(key, 5)

    # Small NCHW input consistent with Conv2d(1, 1, 1): (N=2, C=1, H=16, W=16)
    x = jax.random.normal(kx, (2, 1, 16, 16), dtype=jnp.float32)

    # Deterministic "conv" parameters (each conv is weight (1,1,1,1) + bias (1,))
    w_pre = jax.random.normal(kw0, (), dtype=jnp.float32) * 0.5
    b_pre = jax.random.normal(kb0, (), dtype=jnp.float32) * 0.1
    w_conv = jax.random.normal(kw1, (), dtype=jnp.float32) * 0.5
    b_conv = jax.random.normal(kb1, (), dtype=jnp.float32) * 0.1

    out = jax.block_until_ready(m_forward(x, w_pre, b_pre, w_conv, b_conv))

    ref = m_forward_ref(x, w_pre, b_pre, w_conv, b_conv)
    assert out.shape == x.shape and out.dtype == jnp.float32
    assert jnp.allclose(out, ref, atol=1e-4, rtol=1e-4), "mismatch vs reference"

    print("KERNEL_OK")
</pallas_src>

<mosaic_0001>
module attributes {stable_mosaic.version = 11 : i64} {
  func.func @_fused_kernel(%arg0: i32, %arg1: memref<4xf32, #tpu.memory_space<smem>>, %arg2: memref<1x512xf32, #tpu.memory_space<vmem>>, %arg3: memref<1x512xf32, #tpu.memory_space<vmem>>) attributes {dimension_semantics = [#tpu.dimension_semantics<parallel>], iteration_bounds = array<i64: 1>, scalar_prefetch = 0 : i64, scratch_operands = 0 : i64, tpu.core_type = #tpu.core_type<tc>, window_params = [{transform_indices = @transform_0, window_bounds = array<i64: 4>}, {transform_indices = @transform_1, window_bounds = array<i64: 1, 512>}, {transform_indices = @transform_2, window_bounds = array<i64: 1, 512>}]} {
    %c0 = arith.constant 0 : index
    %0 = memref.load %arg1[%c0] : memref<4xf32, #tpu.memory_space<smem>>
    %c1 = arith.constant 1 : index
    %1 = memref.load %arg1[%c1] : memref<4xf32, #tpu.memory_space<smem>>
    %c2 = arith.constant 2 : index
    %2 = memref.load %arg1[%c2] : memref<4xf32, #tpu.memory_space<smem>>
    %c3 = arith.constant 3 : index
    %3 = memref.load %arg1[%c3] : memref<4xf32, #tpu.memory_space<smem>>
    %c0_0 = arith.constant 0 : index
    %c0_1 = arith.constant 0 : index
    %4 = vector.load %arg2[%c0_0, %c0_1] : memref<1x512xf32, #tpu.memory_space<vmem>>, vector<1x512xf32>
    %5 = vector.broadcast %0 : f32 to vector<1x512xf32>
    %6 = arith.mulf %4, %5 : vector<1x512xf32>
    %7 = vector.broadcast %1 : f32 to vector<1x512xf32>
    %8 = arith.addf %6, %7 : vector<1x512xf32>
    %9 = vector.broadcast %2 : f32 to vector<1x512xf32>
    %10 = arith.mulf %4, %9 : vector<1x512xf32>
    %11 = vector.broadcast %3 : f32 to vector<1x512xf32>
    %12 = arith.addf %10, %11 : vector<1x512xf32>
    %cst = arith.constant 5.000000e-01 : f32
    %13 = vector.broadcast %cst : f32 to vector<1x512xf32>
    %14 = arith.mulf %13, %12 : vector<1x512xf32>
    %15 = math.tanh %14 : vector<1x512xf32>
    %cst_2 = arith.constant 5.000000e-01 : f32
    %16 = vector.broadcast %cst_2 : f32 to vector<1x512xf32>
    %17 = arith.mulf %16, %15 : vector<1x512xf32>
    %cst_3 = arith.constant 5.000000e-01 : f32
    %18 = vector.broadcast %cst_3 : f32 to vector<1x512xf32>
    %19 = arith.addf %17, %18 : vector<1x512xf32>
    %20 = arith.mulf %12, %19 : vector<1x512xf32>
    %21 = arith.addf %8, %20 : vector<1x512xf32>
    %c0_4 = arith.constant 0 : index
    %c0_5 = arith.constant 0 : index
    %22 = vector.load %arg3[%c0_4, %c0_5] : memref<1x512xf32, #tpu.memory_space<vmem>>, vector<1x512xf32>
    tpu.vector_store %arg3[%c0_4, %c0_5], %21 {strides = array<i32>} : memref<1x512xf32, #tpu.memory_space<vmem>>, vector<1x512xf32>,
    return
  }
  func.func @transform_0(%arg0: i32) -> i32 {
    %c0_i32 = arith.constant 0 : i32
    %c0_i32_0 = arith.constant 0 : i32
    return %c0_i32 : i32
  }
  func.func @transform_1(%arg0: i32) -> (i32, i32) {
    %c0_i32 = arith.constant 0 : i32
    %c0_i32_0 = arith.constant 0 : i32
    return %arg0, %c0_i32 : i32, i32
  }
  func.func @transform_2(%arg0: i32) -> (i32, i32) {
    %c0_i32 = arith.constant 0 : i32
    %c0_i32_0 = arith.constant 0 : i32
    return %arg0, %c0_i32 : i32, i32
  }
}

</mosaic_0001>

<llo_original>
// kernel: m_forward.1
$region0: #{m_forward.1}
  #allocation0 [shape = 'u32[]', space=smem, size = 0x4, offset = 0x4, fixed_abs, tag = 'smem constant byte address 0x4 - core index']
  #allocation1 [shape = 'u32[72,128]{1,0:T(1,128)}', space=vmem, size = 0x9000, scoped, tag = 'internal scratch']
  %s0 = inlined_call_operand.vmem [shape: f32[4], index: 0, kind: input, shape index: {}]
  %s1 = inlined_call_operand.vmem [shape: f32[1,512], index: 1, kind: input, shape index: {}]
  %s2 = inlined_call_operand.vmem [shape: f32[1,512], index: 2, kind: output, shape index: {}]
  %s3 = sld [smem:[#allocation0]]
  $region22: #{m_forward.1} parent=0
    _
  %s5 = ssub.s32 1, %s3
  %s6 = scalar_select 0, %s5, %s3
  $region1: #{m_forward.1} parent=0
    #allocation2 [shape = 'u8[512]{0}', space=smem, size = 0x200, scoped, tag = 'input window, operand 0, single buffered']
    #allocation3 [shape = 's32[1]{0}', space=sflag, size = 0x4, scoped, tag = 'scoped memory for m_forward.1']
    %7 = vsyncpa [#allocation3], 0
    // Predicated region
    $region2: #{m_forward.1} parent=1 // pred_check
      _
    $region3: #{m_forward.1} parent=1 // pred_check_branch
      %9 = sbr.rel (0) target = $region5
    $region4: #{m_forward.1} parent=1 // pred_region
      %11 = vsyncadd [#allocation3], 0
      %s13 = sshll.u32 %s0, 4
      %s14 = int_to_ptr.vmem [resolvable:$true] %s13
      %16 = dma.vmem_to_smem %s14, 16, [#allocation2], [#allocation3]
    $region5: #{m_forward.1} parent=1 // pred_fallthru
      _
    // Predicated region
    $region6: #{m_forward.1} parent=1 // pred_check
      _
    $region7: #{m_forward.1} parent=1 // pred_check_branch
      %18 = sbr.rel (0) target = $region9
    $region8: #{m_forward.1} parent=1 // pred_region
      _
    $region9: #{m_forward.1} parent=1 // pred_fallthru
      _
    // Predicated region
    $region10: #{m_forward.1} parent=1 // pred_check
      _
    $region11: #{m_forward.1} parent=1 // pred_check_branch
      %20 = sbr.rel (0) target = $region13
    $region12: #{m_forward.1} parent=1 // pred_region
      %22 = dma.done [#allocation3], 16
    $region13: #{m_forward.1} parent=1 // pred_fallthru
      _
    %23 = sfence
    %s24 = sld [smem:[#allocation2]]
    %s25 = sld [smem:[#allocation2 + $0x1]]
    %s26 = sld [smem:[#allocation2 + $0x2]]
    %s27 = sld [smem:[#allocation2 + $0x3]]
    %v28 = vld [vmem:[%s1] sm:$0xf]
    %v29 = vstv %s24
    %v30 = vmul.f32 %v28, %v29
    %v31 = vstv %s25
    %v32 = vadd.f32 %v30, %v31
    %v33 = vstv %s26
    %v34 = vmul.f32 %v28, %v33
    %v35 = vstv %s27
    %v36 = vadd.f32 %v34, %v35
    %v37 = vmul.f32 %v36, 0.5
    %v38 = vtanh.pop %v37
    %v39 = vmul.f32 %v38, 0.5
    %v40 = vadd.f32 %v39, 0.5
    %v41 = vmul.f32 %v36, %v40
    %v42 = vadd.f32 %v32, %v41
    %v43 = vlaneseq
    %vm44 = vcmp.ge.s32.totalorder %v43, 0
    %vm45 = vcmp.lt.s32.totalorder %v43, 512
    %vm46 = vmand %vm44, %vm45
    %47 = vst.msk [vmem:[%s2] sm:$0xf] %vm46, %v42
    // Predicated region
    $region14: #{m_forward.1} parent=1 // pred_check
      _
    $region15: #{m_forward.1} parent=1 // pred_check_branch
      %49 = sbr.rel (0) target = $region17
    $region16: #{m_forward.1} parent=1 // pred_region
      _
    $region17: #{m_forward.1} parent=1 // pred_fallthru
      _
    // Predicated region
    $region18: #{m_forward.1} parent=1 // pred_check
      _
    $region19: #{m_forward.1} parent=1 // pred_check_branch
      %51 = sbr.rel (0) target = $region21
    $region20: #{m_forward.1} parent=1 // pred_region
      _
    $region21: #{m_forward.1} parent=1 // pred_fallthru
      _
    %52 = vsyncpa [#allocation3], 1

</llo_original>
